<compile_context>
chip_gen: v7x
topology: tpu7x:2x2x1
jax: 0.10.0
libtpu: 0.0.40
codegen_flags: <defaults>
</compile_context>

<pallas_src>
import numpy as np
import jax
import jax.numpy as jnp
from jax.experimental import pallas as pl
from jax.experimental.pallas import tpu as pltpu

# ------------------------------------------------------------------
# Synthetic residue catalogue (stands in for managan's letter_code /
# `structures` tables; RES_LEN[letter] == len(struct.atoms) - 1 there).
# ------------------------------------------------------------------
LETTER_CODE = ["A", "C", "D", "E"]
RES_LEN = {"A": 4, "C": 5, "D": 7, "E": 8}   # natom per residue type


def _round_up(x: int, m: int) -> int:
    return (x + m - 1) // m * m


def make_params(vdim: int, key):
    """One VecLinear weight per residue letter: W (natom, vdim), no bias."""
    params = {}
    for i, letter in enumerate(LETTER_CODE):
        k = jax.random.fold_in(key, i)
        natom = RES_LEN[letter]
        params[letter] = (
            jax.random.normal(k, (natom, vdim), jnp.float32) / np.sqrt(vdim)
        )
    return params


# ------------------------------------------------------------------
# Pallas kernel:
#   OUT_tile = W[letter(tile)] @ X_tile + POS_tile  (pos broadcast over atoms)
# W stack is VMEM-resident; letter is read from the scalar-prefetched table.
# ------------------------------------------------------------------
def _decode_kernel(tile_letter_ref, w_ref, x_ref, pos_ref, o_ref):
    li = tile_letter_ref[pl.program_id(0)]          # SMEM scalar read
    w = w_ref[li]                                   # (natom_pad, V), dynamic leading-dim index
    acc = jnp.dot(w, x_ref[...], preferred_element_type=jnp.float32)
    o_ref[...] = (acc + pos_ref[...]).astype(o_ref.dtype)


def _grouped_decode_pallas(tile_letter, w_stack, x_cols, pos_cols, lane_tile):
    n_letters, natom_pad, V = w_stack.shape
    _, total_cols = x_cols.shape
    num_tiles = total_cols // lane_tile

    x_itemsize = x_cols.dtype.itemsize
    flops = 2 * natom_pad * V * total_cols
    bytes_accessed = (x_itemsize * V * total_cols            # X
                      + 4 * natom_pad * total_cols           # OUT (f32)
                      + 4 * total_cols                       # POS (f32)
                      + w_stack.dtype.itemsize * n_letters * natom_pad * V)

    grid_spec = pltpu.PrefetchScalarGridSpec(
        num_scalar_prefetch=1,
        grid=(num_tiles,),
        in_specs=[
            # whole weight stack resident in VMEM (constant index_map -> fetched once)
            pl.BlockSpec((n_letters, natom_pad, V), lambda j, tl: (0, 0, 0)),
            pl.BlockSpec((V, lane_tile), lambda j, tl: (0, j)),
            pl.BlockSpec((1, lane_tile), lambda j, tl: (0, j)),
        ],
        out_specs=pl.BlockSpec((natom_pad, lane_tile), lambda j, tl: (0, j)),
    )
    return pl.pallas_call(
        _decode_kernel,
        out_shape=jax.ShapeDtypeStruct((natom_pad, total_cols), jnp.float32),
        grid_spec=grid_spec,
        compiler_params=pltpu.CompilerParams(
            dimension_semantics=("parallel",),
            # explicit 32 MiB: needed on v5e (16 MiB scoped default) once tiles
            # grow; within v7x's 64 MiB physical / 32 MiB scoped budget.
            vmem_limit_bytes=32 * 1024 * 1024,
        ),
        cost_estimate=pl.CostEstimate(
            flops=flops, transcendentals=0, bytes_accessed=bytes_accessed),
    )(tile_letter, w_stack, x_cols, pos_cols)


# ------------------------------------------------------------------
# V-aware lane-tile heuristic (kernel is HBM/per-step-overhead bound)
# ------------------------------------------------------------------
def _pick_lane_tile(V, natom_pad, x_itemsize, group_cols):
    bytes_per_col = x_itemsize * V + 4 * natom_pad + 4
    # ~2 MB of streamed bytes per grid step amortizes the ~0.35 us step cost
    lane_tile = max(128, (2 * 1024 * 1024 // bytes_per_col) // 128 * 128)
    lane_tile = min(lane_tile, 8192)
    # don't let small letter groups balloon with padded columns
    max_group = max(group_cols) if group_cols else 0
    lane_tile = min(lane_tile, max(128, _round_up(max_group, 128)))
    # v7x VMEM guard: per-step footprint <= 8 MB (x2 double-buffered = 16 MB)
    lane_tile = min(lane_tile,
                    max(128, (8 * 1024 * 1024 // bytes_per_col) // 128 * 128))

    # keep >= 2 grid tiles when there is enough work (v7x has 2 TensorCores)
    def ntiles(t):
        return sum(-(-gc // t) for gc in group_cols if gc)

    while lane_tile > 128 and ntiles(lane_tile) < 2:
        lane_tile = max(128, (lane_tile // 2) // 128 * 128)
    return lane_tile


# ------------------------------------------------------------------
# Wrapper == ResiduesDecode.forward (nlin = 1)
# ------------------------------------------------------------------
def residues_decode(pos_ca, x_v, seq, params,
                    compute_dtype=jnp.float32, lane_tile=None):
    """pos_ca: (B, R, 3), x_v: (B, R, V, 3)  ->  (B, A, 3)

    compute_dtype: jnp.float32 (bit-faithful) or jnp.bfloat16 (recommended on
    v6e/v7x; halves the dominant X stream, f32 MXU accumulate kept).
    """
    B, R, V, _ = x_v.shape
    assert pos_ca.shape == (B, R, 3)
    assert len(seq) == R
    letters = LETTER_CODE
    n_letters = len(letters)
    cols_per_res = B * 3

    # ---------- static schedule derived from seq (numpy, trace time) ----------
    groups = [[i for i, c in enumerate(seq) if c == L] for L in letters]
    natom_pad = _round_up(max(RES_LEN[L] for L in letters), 8)
    A = int(sum(RES_LEN[c] for c in seq))
    if R == 0 or A == 0:
        return jnp.zeros((B, 0, 3), jnp.float32)   # empty-seq guard (no grid)

    group_cols = [len(g) * cols_per_res for g in groups]
    if lane_tile is None:
        lane_tile = _pick_lane_tile(V, natom_pad,
                                    np.dtype(compute_dtype).itemsize,
                                    group_cols)

    col_src_chunks = []                 # padded-col -> flat (r, b, xyz) source col
    tile_letter = []                    # grid tile -> letter id
    group_col_off = [0] * n_letters     # column offset of each group's valid region
    off = 0
    for li, L in enumerate(letters):
        g = groups[li]
        if not g:
            continue
        ncol_valid = len(g) * cols_per_res
        ncol_pad = _round_up(ncol_valid, lane_tile)
        src = np.concatenate(
            [np.arange(r * cols_per_res, (r + 1) * cols_per_res) for r in g])
        col_src_chunks.append(
            np.concatenate([src, np.zeros(ncol_pad - ncol_valid, np.int64)]))
        group_col_off[li] = off
        tile_letter.extend([li] * (ncol_pad // lane_tile))
        off += ncol_pad
    total_cols = off
    col_src = jnp.asarray(np.concatenate(col_src_chunks).astype(np.int32))
    tile_letter = jnp.asarray(np.asarray(tile_letter, np.int32))

    # ---------- small weight stack (n_letters, natom_pad, V), VMEM-resident ----------
    w_np = np.zeros((n_letters, natom_pad, V), np.float32)
    for li, L in enumerate(letters):
        w_np[li, :RES_LEN[L], :] = np.asarray(params[L])
    w_stack = jnp.asarray(w_np, compute_dtype)

    # ---------- lane-dense operands ----------
    # TODO(synk): this transpose + take are one extra HBM pass over X each; the
    # only way to remove them is to produce X already in (V, residue*batch*xyz)
    # layout upstream (an in-kernel DMA gather would run at ~B*3*4-byte
    # granularity and be slower than these bulk XLA passes).
    x_flat = jnp.transpose(x_v, (2, 1, 0, 3)).reshape(V, R * cols_per_res)
    x_cols = jnp.take(x_flat, col_src, axis=1).astype(compute_dtype)  # (V, total_cols)
    pos_flat = jnp.transpose(pos_ca, (1, 0, 2)).reshape(R * cols_per_res)
    pos_cols = jnp.take(pos_flat, col_src)[None, :].astype(jnp.float32)  # (1, total_cols)

    out_cols = _grouped_decode_pallas(tile_letter, w_stack, x_cols, pos_cols,
                                      lane_tile)          # (natom_pad, total_cols) f32

    # ---------- un-pad: per-letter rectangular slices + one atom permutation ----------
    parts = []
    res_sorted_base = np.zeros((R,), np.int64)
    base = 0
    for li, L in enumerate(letters):
        g = groups[li]
        if not g:
            continue
        natom = RES_LEN[L]
        ncols = len(g) * cols_per_res
        start = group_col_off[li]
        blk = out_cols[:natom, start:start + ncols]                    # dense rectangle
        blk = (blk.reshape(natom, len(g), B, 3)
                  .transpose(1, 0, 2, 3)
                  .reshape(len(g) * natom, B, 3))
        parts.append(blk)
        for p, r in enumerate(g):
            res_sorted_base[r] = base + p * natom
        base += len(g) * natom
    out_sorted = jnp.concatenate(parts, axis=0)                        # (A, B, 3) letter-sorted
    perm = np.concatenate(
        [res_sorted_base[i] + np.arange(RES_LEN[c]) for i, c in enumerate(seq)])
    out = jnp.take(out_sorted, jnp.asarray(perm.astype(np.int32)), axis=0)
    return jnp.transpose(out, (1, 0, 2))                               # (B, A, 3)


# ------------------------------------------------------------------
# Pure-JAX reference (mirrors the PyTorch forward literally)
# ------------------------------------------------------------------
def residues_decode_ref(pos_ca, x_v, seq, params):
    outs = []
    for i, c in enumerate(seq):
        W = params[c]                                  # (natom, vdim)
        y = jnp.einsum("ov,bvd->bod", W, x_v[:, i]) + pos_ca[:, i][:, None, :]
        outs.append(y)
    return jnp.concatenate(outs, axis=1)


if __name__ == "__main__":
    key = jax.random.PRNGKey(0)
    B, R, V = 2, 8, 32
    seq = "ACDEACDA"          # 8 residues -> total atoms = 44
    assert len(seq) == R

    params = make_params(V, jax.random.fold_in(key, 100))
    pos_ca = jax.random.normal(jax.random.fold_in(key, 1), (B, R, 3), jnp.float32)
    x_v = jax.random.normal(jax.random.fold_in(key, 2), (B, R, V, 3), jnp.float32)

    ref = residues_decode_ref(pos_ca, x_v, seq, params)
    A = sum(RES_LEN[c] for c in seq)

    # f32 path (bit-faithful)
    out = residues_decode(pos_ca, x_v, seq, params)
    jax.block_until_ready(out)
    assert out.shape == ref.shape == (B, A, 3)
    np.testing.assert_allclose(np.asarray(out), np.asarray(ref),
                               rtol=1e-5, atol=1e-5)

    # bf16-input path (recommended on v6e/v7x; f32 accumulate) -> looser tolerance
    out_bf16 = residues_decode(pos_ca, x_v, seq, params,
                               compute_dtype=jnp.bfloat16)
    jax.block_until_ready(out_bf16)
    np.testing.assert_allclose(np.asarray(out_bf16), np.asarray(ref),
                               rtol=5e-2, atol=5e-2)

    # missing-letter-group sanity check
    seq2 = "ADDA"
    pos2 = jax.random.normal(jax.random.fold_in(key, 3), (B, 4, 3), jnp.float32)
    xv2 = jax.random.normal(jax.random.fold_in(key, 4), (B, 4, V, 3), jnp.float32)
    out2 = residues_decode(pos2, xv2, seq2, params)
    jax.block_until_ready(out2)
    np.testing.assert_allclose(
        np.asarray(out2),
        np.asarray(residues_decode_ref(pos2, xv2, seq2, params)),
        rtol=1e-5, atol=1e-5)

    print("KERNEL_OK")
</pallas_src>

<mosaic_0001>
module attributes {stable_mosaic.version = 11 : i64} {
  func.func @_decode_kernel(%arg0: i32, %arg1: memref<4xi32, #tpu.memory_space<smem>>, %arg2: memref<4x8x32xf32, #tpu.memory_space<vmem>>, %arg3: memref<32x128xf32, #tpu.memory_space<vmem>>, %arg4: memref<1x128xf32, #tpu.memory_space<vmem>>, %arg5: memref<8x128xf32, #tpu.memory_space<vmem>>) attributes {dimension_semantics = [#tpu.dimension_semantics<parallel>], iteration_bounds = array<i64: 4>, scalar_prefetch = 1 : i64, scratch_operands = 0 : i64, tpu.core_type = #tpu.core_type<tc>, window_params = [{pipeline_mode = #tpu.pipeline_mode<synchronous>, transform_indices = @transform_0, window_bounds = array<i64: 4, 8, 32>}, {transform_indices = @transform_1, window_bounds = array<i64: 32, 128>}, {transform_indices = @transform_2, window_bounds = array<i64: 1, 128>}, {transform_indices = @transform_3, window_bounds = array<i64: 8, 128>}]} {
    %0 = arith.index_cast %arg0 : i32 to index
    %1 = memref.load %arg1[%0] : memref<4xi32, #tpu.memory_space<smem>>
    %2 = arith.index_cast %1 : i32 to index
    %c0 = arith.constant 0 : index
    %c0_0 = arith.constant 0 : index
    %3 = vector.load %arg2[%2, %c0, %c0_0] : memref<4x8x32xf32, #tpu.memory_space<vmem>>, vector<1x8x32xf32>
    %4 = vector.shape_cast %3 : vector<1x8x32xf32> to vector<8x32xf32>
    %c0_1 = arith.constant 0 : index
    %c0_2 = arith.constant 0 : index
    %5 = vector.load %arg3[%c0_1, %c0_2] : memref<32x128xf32, #tpu.memory_space<vmem>>, vector<32x128xf32>
    %cst = arith.constant dense<0.000000e+00> : vector<8x128xf32>
    %6 = tpu.matmul %4, %5, %cst {dimension_numbers = #tpu.dot_dimension_numbers<[1], [0], [0], [1], [0, 0, 1, 1], [], []>} : vector<8x32xf32>, vector<32x128xf32>, vector<8x128xf32> -> vector<8x128xf32>
    %c0_3 = arith.constant 0 : index
    %c0_4 = arith.constant 0 : index
    %7 = vector.load %arg4[%c0_3, %c0_4] : memref<1x128xf32, #tpu.memory_space<vmem>>, vector<1x128xf32>
    %8 = vector.broadcast %7 : vector<1x128xf32> to vector<8x128xf32>
    %9 = arith.addf %6, %8 : vector<8x128xf32>
    %c0_5 = arith.constant 0 : index
    %c0_6 = arith.constant 0 : index
    %10 = vector.load %arg5[%c0_5, %c0_6] : memref<8x128xf32, #tpu.memory_space<vmem>>, vector<8x128xf32>
    tpu.vector_store %arg5[%c0_5, %c0_6], %9 {strides = array<i32>} : memref<8x128xf32, #tpu.memory_space<vmem>>, vector<8x128xf32>,
    return
  }
  func.func @transform_0(%arg0: i32, %arg1: memref<4xi32, #tpu.memory_space<smem>>) -> (i32, i32, i32) {
    %c0_i32 = arith.constant 0 : i32
    %c0_i32_0 = arith.constant 0 : i32
    %c0_i32_1 = arith.constant 0 : i32
    %c0_i32_2 = arith.constant 0 : i32
    return %c0_i32, %c0_i32_0, %c0_i32_1 : i32, i32, i32
  }
  func.func @transform_1(%arg0: i32, %arg1: memref<4xi32, #tpu.memory_space<smem>>) -> (i32, i32) {
    %c0_i32 = arith.constant 0 : i32
    %c0_i32_0 = arith.constant 0 : i32
    return %c0_i32, %arg0 : i32, i32
  }
  func.func @transform_2(%arg0: i32, %arg1: memref<4xi32, #tpu.memory_space<smem>>) -> (i32, i32) {
    %c0_i32 = arith.constant 0 : i32
    %c0_i32_0 = arith.constant 0 : i32
    return %c0_i32, %arg0 : i32, i32
  }
  func.func @transform_3(%arg0: i32, %arg1: memref<4xi32, #tpu.memory_space<smem>>) -> (i32, i32) {
    %c0_i32 = arith.constant 0 : i32
    %c0_i32_0 = arith.constant 0 : i32
    return %c0_i32, %arg0 : i32, i32
  }
}

</mosaic_0001>

<llo_original>
// kernel: tpu_custom_call.1
$region0: #{tpu_custom_call.1}
  #allocation0 [shape = 'u32[]', space=smem, size = 0x4, offset = 0x4, fixed_abs, tag = 'smem constant byte address 0x4 - core index']
  #allocation1 [shape = 'u32[144,128]{1,0:T(1,128)}', space=vmem, size = 0x12000, scoped, tag = 'internal scratch']
  #allocation2 [shape = 's32[1]{0}', space=sflag, size = 0x4, scoped, tag = 'scoped memory for tpu_custom_call.1']
  #allocation3 [shape = 'u8[512]{0}', space=smem, size = 0x200, scoped, tag = 'prefetched SMEM operand 0']
  %s0 = inlined_call_operand.hbm [shape: s32[4], index: 0, kind: input, shape index: {}]
  %s1 = inlined_call_operand.hbm [shape: f32[4,8,32], index: 1, kind: input, shape index: {}]
  %s2 = inlined_call_operand.hbm [shape: f32[32,512], index: 2, kind: input, shape index: {}]
  %s3 = inlined_call_operand.vmem [shape: f32[1,512], index: 3, kind: input, shape index: {}]
  %s4 = inlined_call_operand.hbm [shape: f32[8,512], index: 4, kind: output, shape index: {}]
  %s5 = sld [smem:[#allocation0]]
  $region53: #{tpu_custom_call.1} parent=0
    _
  %s7 = ssub.s32 1, %s5
  %s8 = scalar_select 0, %s7, %s5
  %10 = dma.hbm_to_smem %s0, 16, [#allocation3], [#allocation2]
  %11 = dma.done [#allocation2], 16
  %12 = sfence
  $region1: #{tpu_custom_call.1} parent=0
    #allocation4 [shape = 'u8[16384]{0}', space=vmem, size = 0x4000, scoped, tag = 'input window, operand 1, single buffered']
    #allocation5 [shape = 's32[2]{0}', space=sflag, size = 0x8, scoped, tag = 'scoped memory for tpu_custom_call.1']
    #allocation6 [shape = 's32[2]{0}', space=sflag, size = 0x8, scoped, tag = 'scoped memory for tpu_custom_call.1']
    #allocation7 [shape = 'u8[32768]{0}', space=vmem, size = 0x8000, scoped, tag = 'input window, operand 2']
    #allocation8 [shape = 's32[2]{0}', space=sflag, size = 0x8, scoped, tag = 'scoped memory for tpu_custom_call.1']
    #allocation9 [shape = 'u8[8192]{0}', space=vmem, size = 0x2000, scoped, tag = 'output window, operand 0']
    %13 = vsyncpa [#allocation5], 0
    %14 = vsyncpa [#allocation8], 0
    %s15 = scalar_lea.sflag [#allocation8], 1
    %16 = vsyncpa %s15, 0
    %17 = vsyncpa [#allocation6], 0
    %s18 = scalar_lea.sflag [#allocation6], 1
    %19 = vsyncpa %s18, 0
    loop: start=0, step=1, limit=6
    $region2: #{tpu_custom_call.1} parent=1 // loop_pre_header
      _
    $region3: #{tpu_custom_call.1} parent=1 // loop_header
      %s21 = sphi 0, %s25
      %p22 = scmp.ge.s32.totalorder %s21, 6
      %s29 = sphi 0, %s29
      %s31 = sphi 0, %s29
      %s32 = sphi 0, %s31
      %s46 = sphi 0, %s32
      %s52 = sphi 0, %s54
      %s55 = sphi 0, %s52
      %s56 = sphi 0, %s55
      %s72 = sphi 0, %s56
      %s78 = sphi 0, %s80
      %s81 = sphi 0, %s78
      %s82 = sphi 0, %s81
      %s98 = sphi 0, %s82
      %s104 = sphi 0, %s106
      %s107 = sphi 0, %s104
      %s108 = sphi 0, %s107
      %s124 = sphi 0, %s108
    $region4: #{tpu_custom_call.1} parent=1 // loop_header_branch
      %24 = sbr.rel (%p22) target = $region8
    $region5: #{tpu_custom_call.1} parent=1 // loop_body
      %s26 = ssub.s32 %s21, 1
      %s27 = ssub.s32 %s21, 2
      %s28 = sadd.s32 %s21, 1
      %s30 = sadd.s32 %s29, 1
      %p33 = scmp.eq.s32.totalorder %s21, 3
      %p34 = scmp.ne.s32.totalorder %s29, %s31
      %p35 = scmp.eq.s32.totalorder %s21, 0
      %p36 = por %p34, %p35
      %p37 = scmp.ne.s32.totalorder %s29, %s31
      %p38 = scmp.eq.s32.totalorder %s26, 3
      %p39 = por %p37, %p38
      %p40 = scmp.ne.s32.totalorder %s31, %s32
      %p41 = scmp.eq.s32.totalorder %s26, 0
      %p42 = por %p40, %p41
      %p43 = scmp.ne.s32.totalorder %s31, %s32
      %p44 = scmp.eq.s32.totalorder %s27, 3
      %p45 = por %p43, %p44
      %p47 = scmp.ne.s32.totalorder %s32, %s46
      %p48 = scmp.eq.s32.totalorder %s27, 0
      %p49 = por %p47, %p48
      %s50 = ssub.s32 %s21, %s28
      %p51 = scmp.eq.s32.totalorder %s50, 0
      %s53 = sadd.s32 %s52, 1
      %s54 = scalar_select %p51, %s52, %s53
      %p57 = pneg %p51
      %p58 = scmp.eq.s32.totalorder %s21, 3
      %p59 = por %p57, %p58
      %p60 = scmp.ne.s32.totalorder %s52, %s55
      %p61 = scmp.eq.s32.totalorder %s21, 0
      %p62 = por %p60, %p61
      %p63 = scmp.ne.s32.totalorder %s52, %s55
      %p64 = scmp.eq.s32.totalorder %s26, 3
      %p65 = por %p63, %p64
      %p66 = scmp.ne.s32.totalorder %s55, %s56
      %p67 = scmp.eq.s32.totalorder %s26, 0
      %p68 = por %p66, %p67
      %p69 = scmp.ne.s32.totalorder %s55, %s56
      %p70 = scmp.eq.s32.totalorder %s27, 3
      %p71 = por %p69, %p70
      %p73 = scmp.ne.s32.totalorder %s56, %s72
      %p74 = scmp.eq.s32.totalorder %s27, 0
      %p75 = por %p73, %p74
      %s76 = ssub.s32 %s21, %s28
      %p77 = scmp.eq.s32.totalorder %s76, 0
      %s79 = sadd.s32 %s78, 1
      %s80 = scalar_select %p77, %s78, %s79
      %p83 = pneg %p77
      %p84 = scmp.eq.s32.totalorder %s21, 3
      %p85 = por %p83, %p84
      %p86 = scmp.ne.s32.totalorder %s78, %s81
      %p87 = scmp.eq.s32.totalorder %s21, 0
      %p88 = por %p86, %p87
      %p89 = scmp.ne.s32.totalorder %s78, %s81
      %p90 = scmp.eq.s32.totalorder %s26, 3
      %p91 = por %p89, %p90
      %p92 = scmp.ne.s32.totalorder %s81, %s82
      %p93 = scmp.eq.s32.totalorder %s26, 0
      %p94 = por %p92, %p93
      %p95 = scmp.ne.s32.totalorder %s81, %s82
      %p96 = scmp.eq.s32.totalorder %s27, 3
      %p97 = por %p95, %p96
      %p99 = scmp.ne.s32.totalorder %s82, %s98
      %p100 = scmp.eq.s32.totalorder %s27, 0
      %p101 = por %p99, %p100
      %s102 = ssub.s32 %s21, %s28
      %p103 = scmp.eq.s32.totalorder %s102, 0
      %s105 = sadd.s32 %s104, 1
      %s106 = scalar_select %p103, %s104, %s105
      %p109 = pneg %p103
      %p110 = scmp.eq.s32.totalorder %s21, 3
      %p111 = por %p109, %p110
      %p112 = scmp.ne.s32.totalorder %s104, %s107
      %p113 = scmp.eq.s32.totalorder %s21, 0
      %p114 = por %p112, %p113
      %p115 = scmp.ne.s32.totalorder %s104, %s107
      %p116 = scmp.eq.s32.totalorder %s26, 3
      %p117 = por %p115, %p116
      %p118 = scmp.ne.s32.totalorder %s107, %s108
      %p119 = scmp.eq.s32.totalorder %s26, 0
      %p120 = por %p118, %p119
      %p121 = scmp.ne.s32.totalorder %s107, %s108
      %p122 = scmp.eq.s32.totalorder %s27, 3
      %p123 = por %p121, %p122
      %p125 = scmp.ne.s32.totalorder %s108, %s124
      %p126 = scmp.eq.s32.totalorder %s27, 0
      %p127 = por %p125, %p126
      %p128 = scmp.le.s32.totalorder 1, %s21
      %p129 = scmp.lt.s32.totalorder %s21, 5
      %p130 = pnand %p128, %p129
      %p131 = pneg %p130
      // Predicated region
      $region9: #{tpu_custom_call.1} parent=5 // pred_check
        _
      $region10: #{tpu_custom_call.1} parent=5 // pred_check_branch
        %133 = sbr.rel (%p130) target = $region12
      $region11: #{tpu_custom_call.1} parent=5 // pred_region
        %s134 = ssub.s32 %s21, 1
        // Predicated region
        $region13: #{tpu_custom_call.1} parent=11 // pred_check
          %p135 = pneg %p42
        $region14: #{tpu_custom_call.1} parent=11 // pred_check_branch
          %137 = sbr.rel (%p135) target = $region16
        $region15: #{tpu_custom_call.1} parent=11 // pred_region
          %s139 = ssub.s32 512, 512
          %140 = vsyncadd [#allocation5], %s139
          %s141 = sshll.u32 [#allocation4], 4
          %s142 = int_to_ptr.vmem [resolvable:$true] %s141
          %147 = dma.hbm_to_vmem [thread:$0]  %s1, 512, %s142, [#allocation5], 128, 128, 8
        $region16: #{tpu_custom_call.1} parent=11 // pred_fallthru
          _
      $region12: #{tpu_custom_call.1} parent=5 // pred_fallthru
        _
      %p148 = scmp.lt.s32.totalorder %s21, 4
      // Predicated region
      $region17: #{tpu_custom_call.1} parent=5 // pred_check
        %p149 = pneg %p148
      $region18: #{tpu_custom_call.1} parent=5 // pred_check_branch
        %151 = sbr.rel (%p149) target = $region20
      $region19: #{tpu_custom_call.1} parent=5 // pred_region
        // Predicated region
        $region21: #{tpu_custom_call.1} parent=19 // pred_check
          %p152 = pneg %p62
        $region22: #{tpu_custom_call.1} parent=19 // pred_check_branch
          %154 = sbr.rel (%p152) target = $region24
        $region23: #{tpu_custom_call.1} parent=19 // pred_region
          %s155 = sand.u32 %s52, 1
          %s156 = scalar_lea.sflag [#allocation8], %s155
          %s157 = sand.u32 %s52, 1
          %s158 = smul.addr %s157, 32
          %s159 = scalar_lea.vmem [#allocation7], %s158
          %s161 = ssub.s32 512, 512
          %162 = vsyncadd %s156, %s161
          %s163 = smul.addr %s21, 128
          %s164 = scalar_lea.hbm %s2, %s163
          %s165 = sshll.u32 %s159, 4
          %s166 = int_to_ptr.vmem [resolvable:$true] %s165
          %171 = dma.hbm_to_vmem [thread:$0]  %s164, 512, %s166, %s156, 512, 128, 8
        $region24: #{tpu_custom_call.1} parent=19 // pred_fallthru
          _
        // Predicated region
        $region25: #{tpu_custom_call.1} parent=19 // pred_check
          %p172 = pneg %p88
        $region26: #{tpu_custom_call.1} parent=19 // pred_check_branch
          %174 = sbr.rel (%p172) target = $region28
        $region27: #{tpu_custom_call.1} parent=19 // pred_region
          %p175 = scmp.lt.s32.totalorder %s21, 3
          %s176 = scalar_select %p175, %s21, 3
          %s177 = scalar_lea.vmem %s3, %s176
        $region28: #{tpu_custom_call.1} parent=19 // pred_fallthru
          _
      $region20: #{tpu_custom_call.1} parent=5 // pred_fallthru
        _
      %p178 = scmp.le.s32.totalorder 1, %s21
      %p179 = scmp.lt.s32.totalorder %s21, 5
      %p180 = pnand %p178, %p179
      %p181 = pneg %p180
      // Predicated region
      $region29: #{tpu_custom_call.1} parent=5 // pred_check
        _
      $region30: #{tpu_custom_call.1} parent=5 // pred_check_branch
        %183 = sbr.rel (%p180) target = $region32
      $region31: #{tpu_custom_call.1} parent=5 // pred_region
        %s184 = ssub.s32 %s21, 1
        // Predicated region
        $region33: #{tpu_custom_call.1} parent=31 // pred_check
          %p185 = pneg %p42
        $region34: #{tpu_custom_call.1} parent=31 // pred_check_branch
          %187 = sbr.rel (%p185) target = $region36
        $region35: #{tpu_custom_call.1} parent=31 // pred_region
          %188 = dma.done [#allocation5], 512
        $region36: #{tpu_custom_call.1} parent=31 // pred_fallthru
          _
        %s189 = sand.u32 %s55, 1
        %s190 = scalar_lea.sflag [#allocation8], %s189
        %s191 = sand.u32 %s55, 1
        %s192 = smul.addr %s191, 32
        %s193 = scalar_lea.vmem [#allocation7], %s192
        // Predicated region
        $region37: #{tpu_custom_call.1} parent=31 // pred_check
          %p194 = pneg %p68
        $region38: #{tpu_custom_call.1} parent=31 // pred_check_branch
          %196 = sbr.rel (%p194) target = $region40
        $region39: #{tpu_custom_call.1} parent=31 // pred_region
          %197 = dma.done %s190, 512
        $region40: #{tpu_custom_call.1} parent=31 // pred_fallthru
          _
        %p198 = pneg %p42
        %p199 = pneg %p39
        %s200 = sand.u32 %s55, 1
        %s201 = scalar_lea.sflag [#allocation8], %s200
        %s202 = sand.u32 %s55, 1
        %s203 = smul.addr %s202, 32
        %s204 = scalar_lea.vmem [#allocation7], %s203
        %p205 = pneg %p68
        %p206 = pneg %p65
        %p207 = scmp.lt.s32.totalorder %s26, 3
        %s208 = scalar_select %p207, %s26, 3
        %s209 = scalar_lea.vmem %s3, %s208
        %p210 = pneg %p94
        %p211 = pneg %p91
        %p212 = pneg %p120
        %p213 = pneg %p117
        %s214 = sand.u32 %s107, 1
        %s215 = scalar_lea.sflag [#allocation6], %s214
        %s216 = sand.u32 %s107, 1
        %s217 = smul.addr %s216, 8
        %s218 = scalar_lea.vmem [#allocation9], %s217
        %p219 = scmp.lt.s32.totalorder %s26, 3
        %s220 = scalar_select %p219, %s26, 3
        %s221 = scalar_lea.vmem %s3, %s220
        %s222 = sld [smem:[#allocation3 + %s26]]
        %s223 = smul.u32 %s222, 8
        %s224 = scalar_lea.vmem [#allocation4], %s223
        %v225 = vld [vmem:[%s224] sm:$0xff]
        %v226 = vld [vmem:[%s193] sm:$0xff]
        %v227 = vld [vmem:[%s193 + $0x8] sm:$0xff]
        %v228 = vld [vmem:[%s193 + $0x10] sm:$0xff]
        %v229 = vld [vmem:[%s193 + $0x18] sm:$0xff]
        %v230 = vld [vmem:[%s221] sm:$0x1]
        %v232 = vlaneseq
        %v233 = vshrl.u32 %v232, 7
        %v234 = vsub.s32 0, %v233
        %v235 = vrot.slane %v230, %v234
        %vm237 = vcmask 261120
        %v239 = vsel %vm237, %v225, 0
        %241 = vmatprep.subr.mxu0 0.0
        %242 = vmatpush1.msra.mxu0 %v226
        %243 = vmatprep.subr.mxu0 0.0
        %244 = vmatpush1.msra.mxu0 %v227
        %245 = vmatprep.subr.mxu0 0.0
        %246 = vmatpush1.msra.mxu0 %v228
        %247 = vmatprep.subr.mxu0 0.0
        %248 = vmatpush1.msra.mxu0 %v229
        %249 = vmatprep.subr.mxu0 0.0
        %250 = vmatpush1.msra.mxu0 0.0
        %251 = vmatprep.subr.mxu0 0.0
        %252 = vmatpush1.msra.mxu0 0.0
        %253 = vmatprep.subr.mxu0 0.0
        %254 = vmatpush1.msra.mxu0 0.0
        %255 = vmatprep.subr.mxu0 0.0
        %256 = vmatpush1.msra.mxu0 0.0
        %257 = vmatprep.subr.mxu0 0.0
        %258 = vmatpush1.msra.mxu0 0.0
        %259 = vmatprep.subr.mxu0 0.0
        %260 = vmatpush1.msra.mxu0 0.0
        %261 = vmatprep.subr.mxu0 0.0
        %262 = vmatpush1.msra.mxu0 0.0
        %263 = vmatprep.subr.mxu0 0.0
        %264 = vmatpush1.msra.mxu0 0.0
        %265 = vmatprep.subr.mxu0 0.0
        %266 = vmatpush1.msra.mxu0 0.0
        %267 = vmatprep.subr.mxu0 0.0
        %268 = vmatpush1.msra.mxu0 0.0
        %269 = vmatprep.subr.mxu0 0.0
        %270 = vmatpush1.msra.mxu0 0.0
        %271 = vmatprep.subr.mxu0 0.0
        %272 = vmatpush1.msra.mxu0 0.0
        %273 = vmatprep.subr.mxu0 0.0
        %274 = vmatpush1.msra.mxu0 0.0
        %275 = vmatprep.subr.mxu0 0.0
        %276 = vmatpush1.msra.mxu0 0.0
        %277 = vmatprep.subr.mxu0 0.0
        %278 = vmatpush1.msra.mxu0 0.0
        %279 = vmatprep.subr.mxu0 0.0
        %280 = vmatpush1.msra.mxu0 0.0
        %281 = vmatprep.subr.mxu0 0.0
        %282 = vmatpush1.msra.mxu0 0.0
        %283 = vmatprep.subr.mxu0 0.0
        %284 = vmatpush1.msra.mxu0 0.0
        %285 = vmatprep.subr.mxu0 0.0
        %286 = vmatpush1.msra.mxu0 0.0
        %287 = vmatprep.subr.mxu0 0.0
        %288 = vmatpush1.msra.mxu0 0.0
        %289 = vmatprep.subr.mxu0 0.0
        %290 = vmatpush1.msra.mxu0 0.0
        %291 = vmatprep.subr.mxu0 0.0
        %292 = vmatpush1.msra.mxu0 0.0
        %293 = vmatprep.subr.mxu0 0.0
        %294 = vmatpush1.msra.mxu0 0.0
        %295 = vmatprep.subr.mxu0 0.0
        %296 = vmatpush1.msra.mxu0 0.0
        %297 = vmatprep.subr.mxu0 0.0
        %298 = vmatpush1.msra.mxu0 0.0
        %299 = vmatprep.subr.mxu0 0.0
        %300 = vmatpush1.msra.mxu0 0.0
        %301 = vmatprep.subr.mxu0 0.0
        %302 = vmatpush1.msra.mxu0 0.0
        %303 = vmatprep.subr.mxu0 0.0
        %304 = vmatpush1.msra.mxu0 0.0
        %305 = vmatprep.mubr.f32.mxu0 0.0
        %306 = vmatmul.mubr.f32.gmra.mrb[0].mxu0 %v239
        %v307 = vpop.f32.mrb[0].mxu0
        %v308 = vadd.f32 %v235, %v307
        %v309 = vpop.f32.mrb[0].mxu0
        %310 = vdwg.mxu0
        %311 = vst [vmem:[%s218] sm:$0xff] %v308
        %s312 = sand.u32 %s107, 1
        %s313 = scalar_lea.sflag [#allocation6], %s312
        %s314 = sand.u32 %s107, 1
        %s315 = smul.addr %s314, 8
        %s316 = scalar_lea.vmem [#allocation9], %s315
        // Predicated region
        $region41: #{tpu_custom_call.1} parent=31 // pred_check
          %p317 = pneg %p117
        $region42: #{tpu_custom_call.1} parent=31 // pred_check_branch
          %319 = sbr.rel (%p317) target = $region44
        $region43: #{tpu_custom_call.1} parent=31 // pred_region
          %s321 = ssub.s32 128, 128
          %322 = vsyncadd %s313, %s321
          %s323 = smul.addr %s26, 128
          %s324 = scalar_lea.hbm %s4, %s323
          %s326 = sshll.u32 %s316, 4
          %s327 = int_to_ptr.vmem [resolvable:$true] %s326
          %329 = dma.vmem_to_hbm [thread:$0]  %s327, 128, %s324, %s313
        $region44: #{tpu_custom_call.1} parent=31 // pred_fallthru
          _
      $region32: #{tpu_custom_call.1} parent=5 // pred_fallthru
        _
      %p330 = scmp.le.s32.totalorder 2, %s21
      // Predicated region
      $region45: #{tpu_custom_call.1} parent=5 // pred_check
        %p331 = pneg %p330
      $region46: #{tpu_custom_call.1} parent=5 // pred_check_branch
        %333 = sbr.rel (%p331) target = $region48
      $region47: #{tpu_custom_call.1} parent=5 // pred_region
        %s334 = ssub.s32 %s21, 2
        // Predicated region
        $region49: #{tpu_custom_call.1} parent=47 // pred_check
          %p335 = pneg %p123
        $region50: #{tpu_custom_call.1} parent=47 // pred_check_branch
          %337 = sbr.rel (%p335) target = $region52
        $region51: #{tpu_custom_call.1} parent=47 // pred_region
          %s338 = sand.u32 %s108, 1
          %s339 = scalar_lea.sflag [#allocation6], %s338
          %s340 = sand.u32 %s108, 1
          %s341 = smul.addr %s340, 8
          %s342 = scalar_lea.vmem [#allocation9], %s341
          %343 = dma.done %s339, 128
        $region52: #{tpu_custom_call.1} parent=47 // pred_fallthru
          _
      $region48: #{tpu_custom_call.1} parent=5 // pred_fallthru
        _
    $region6: #{tpu_custom_call.1} parent=1 // loop_footer
      %s25 = sadd.s32 1, %s21
    $region7: #{tpu_custom_call.1} parent=1 // loop_footer_branch
      %20 = sbr.rel target = $region3
    $region8: #{tpu_custom_call.1} parent=1 // loop_exit
      _
    %344 = vsyncpa [#allocation5], 1
    %s345 = scalar_lea.sflag [#allocation5], 1
    %346 = vsyncpa %s345, 1
    %347 = vsyncpa [#allocation8], 1
    %s348 = scalar_lea.sflag [#allocation8], 1
    %349 = vsyncpa %s348, 1
    %350 = vsyncpa [#allocation6], 1
    %s351 = scalar_lea.sflag [#allocation6], 1
    %352 = vsyncpa %s351, 1

</llo_original>
